<compile_context>
chip_gen: v5e
topology: v5e:2x2
jax: 0.10.0
libtpu: 0.0.40
codegen_flags: <defaults>
</compile_context>

<pallas_src>
import functools

import jax
import jax.numpy as jnp
from jax.experimental import pallas as pl
from jax.experimental.pallas import tpu as pltpu


# ---------------------------------------------------------------------------
# Kernels
# ---------------------------------------------------------------------------
def _ls_kernel_single_block(x_ref, t_ref, loss_ref, *, num_cols, classes, smoothing):
    """Full class dim in one block: per-row label-smoothed CE -> (tile, 1)."""
    x = x_ref[...]                                             # (tile, C) native dtype
    t = t_ref[...]                                             # (tile, 1) int32

    # Pass 1 (native dtype where exact): row max, pick x[target] (adds zeros,
    # exact even in bf16), and f32-accumulated row sum.
    m = jnp.max(x, axis=-1, keepdims=True).astype(jnp.float32)           # (tile, 1)
    lane = jax.lax.broadcasted_iota(jnp.int32, x.shape, 1)               # (tile, C)
    x_t = jnp.sum(jnp.where(lane == t, x, jnp.zeros_like(x)),
                  axis=-1, keepdims=True).astype(jnp.float32)            # (tile, 1)
    sum_x = jnp.sum(x, axis=-1, keepdims=True, dtype=jnp.float32)        # (tile, 1)

    # Pass 2: exp in f32 (precision), consumed once by the reduction.
    sum_exp = jnp.sum(jnp.exp(x.astype(jnp.float32) - m),
                      axis=-1, keepdims=True)                            # (tile, 1)
    lse = jnp.log(sum_exp)                                               # rel. to m

    z_t = x_t - m
    sum_z = sum_x - float(num_cols) * m
    confidence = 1.0 - smoothing
    off = smoothing / max(classes - 1, 1)
    # loss = -(conf * logp[t] + off * sum_{c != t} logp[c]),  logp = x - m - lse
    loss_ref[...] = (confidence * (lse - z_t)
                     + off * (float(num_cols - 1) * lse + z_t - sum_z))


def _ls_kernel_class_tiled(x_ref, t_ref, loss_ref, m_sc, se_sc, sx_sc, xt_sc, *,
                           num_cols, classes, smoothing, c_tile, need_mask):
    """Class-tiled path for vocab-scale C: online logsumexp across the k axis."""
    k = pl.program_id(1)

    @pl.when(k == 0)
    def _():
        m_sc[...] = jnp.full_like(m_sc, -jnp.inf)
        se_sc[...] = jnp.zeros_like(se_sc)
        sx_sc[...] = jnp.zeros_like(sx_sc)
        xt_sc[...] = jnp.zeros_like(xt_sc)

    x = x_ref[...]                                             # (tile, c_tile)
    t = t_ref[...]                                             # (tile, 1) int32
    lane = jax.lax.broadcasted_iota(jnp.int32, x.shape, 1) + k * c_tile

    blk_max = jnp.max(x, axis=-1, keepdims=True).astype(jnp.float32)
    blk_xt = jnp.sum(jnp.where(lane == t, x, jnp.zeros_like(x)),
                     axis=-1, keepdims=True).astype(jnp.float32)
    if need_mask:
        xs = jnp.where(lane < num_cols, x, jnp.zeros_like(x))
    else:
        xs = x
    blk_sx = jnp.sum(xs, axis=-1, keepdims=True, dtype=jnp.float32)

    m_prev = m_sc[...]
    m_new = jnp.maximum(m_prev, blk_max)
    blk_se = jnp.sum(jnp.exp(x.astype(jnp.float32) - m_new),
                     axis=-1, keepdims=True)
    se_sc[...] = se_sc[...] * jnp.exp(m_prev - m_new) + blk_se
    m_sc[...] = m_new
    sx_sc[...] = sx_sc[...] + blk_sx
    xt_sc[...] = xt_sc[...] + blk_xt

    @pl.when(k == pl.num_programs(1) - 1)
    def _():
        m = m_sc[...]
        lse = jnp.log(se_sc[...])
        z_t = xt_sc[...] - m
        sum_z = sx_sc[...] - float(num_cols) * m
        confidence = 1.0 - smoothing
        off = smoothing / max(classes - 1, 1)
        loss_ref[...] = (confidence * (lse - z_t)
                         + off * (float(num_cols - 1) * lse + z_t - sum_z))


# ---------------------------------------------------------------------------
# Sizing helpers (generation-aware)
# ---------------------------------------------------------------------------
def _round_up(x, m):
    return ((x + m - 1) // m) * m


def _vmem_capacity_bytes():
    try:
        return int(pltpu.get_tpu_info().vmem_capacity_bytes)
    except Exception:
        return 128 * 1024 * 1024  # conservative fallback (v5e/v6e)


def _pick_row_tile(rows_from_budget, N, max_tile=1024):
    tile = int(min(max(rows_from_budget, 8), max_tile))
    tile = (tile // 8) * 8
    n8 = _round_up(max(N, 1), 8)
    tile = min(tile, n8)                  # don't over-pad tiny batches
    # Force >=2 (>=4 when possible) row-grid steps so v7x's two TensorCores
    # both get work from the "parallel" row axis.
    if n8 >= 32:
        tile = min(tile, max(((n8 // 4) // 8) * 8, 8))
    elif n8 >= 16:
        tile = min(tile, max(((n8 // 2) // 8) * 8, 8))
    return max((tile // 8) * 8, 8)


# ---------------------------------------------------------------------------
# Wrapper
# ---------------------------------------------------------------------------
def label_smoothing_loss(pred, target, classes=None, smoothing=0.0,
                         *, force_class_tiling=False, class_tile=None):
    """pred: (N, C) logits (f32 or bf16); target: (N,) int class ids -> scalar."""
    N, C = pred.shape
    if classes is None:
        classes = C
    itemsize = jnp.dtype(pred.dtype).itemsize

    cap = _vmem_capacity_bytes()
    vmem_limit = int(cap * 0.65)          # ~83 MiB on 128 MiB parts, ~41 MiB on v7x
    tile_budget = cap // 3                # target per-step working set

    # Per-row working set with a full-C block: double-buffered input block
    # plus ~2 f32-wide fused passes inside the kernel.
    per_row_full = C * (2 * itemsize + 2 * 4) + 64
    rows_full = tile_budget // max(per_row_full, 1)
    use_class_tiling = force_class_tiling or rows_full < 64

    kern_params = dict(num_cols=int(C), classes=int(classes),
                       smoothing=float(smoothing))

    if not use_class_tiling:
        tile = _pick_row_tile(rows_full, N)
        n_pad = _round_up(N, tile)
        x = pred if n_pad == N else jnp.pad(pred, ((0, n_pad - N), (0, 0)))
        t = target if n_pad == N else jnp.pad(target, (0, n_pad - N))
        t2d = t.astype(jnp.int32).reshape(n_pad, 1)

        per_row_loss = pl.pallas_call(
            functools.partial(_ls_kernel_single_block, **kern_params),
            out_shape=jax.ShapeDtypeStruct((n_pad, 1), jnp.float32),
            grid_spec=pltpu.PrefetchScalarGridSpec(
                num_scalar_prefetch=0,
                grid=(n_pad // tile,),
                in_specs=[
                    pl.BlockSpec((tile, C), lambda i: (i, 0)),   # logits tile
                    pl.BlockSpec((tile, 1), lambda i: (i, 0)),   # targets tile
                ],
                out_specs=pl.BlockSpec((tile, 1), lambda i: (i, 0)),
            ),
            compiler_params=pltpu.CompilerParams(
                dimension_semantics=("parallel",),               # megacore-shardable
                vmem_limit_bytes=vmem_limit,
            ),
        )(x, t2d)
    else:
        # Vocab-scale C: tile the class dim, online logsumexp across k blocks.
        c_tile = class_tile if class_tile is not None else min(8192, _round_up(C, 128))
        c_tile = max(128, (int(c_tile) // 128) * 128)
        c_pad = _round_up(C, c_tile)
        kt = c_pad // c_tile

        per_row_tiled = c_tile * (2 * itemsize + 2 * 4) + 128
        tile = _pick_row_tile(tile_budget // max(per_row_tiled, 1), N)
        n_pad = _round_up(N, tile)

        x = pred
        if n_pad != N:
            x = jnp.pad(x, ((0, n_pad - N), (0, 0)))
        if c_pad != C:
            # Very negative pad: exp() underflows to 0, never the row max,
            # and the row-sum pass masks it out via the lane index.
            x = jnp.pad(x, ((0, 0), (0, c_pad - C)), constant_values=-1e30)
        t = target if n_pad == N else jnp.pad(target, (0, n_pad - N))
        t2d = t.astype(jnp.int32).reshape(n_pad, 1)

        per_row_loss = pl.pallas_call(
            functools.partial(_ls_kernel_class_tiled, c_tile=int(c_tile),
                              need_mask=bool(c_pad != C), **kern_params),
            out_shape=jax.ShapeDtypeStruct((n_pad, 1), jnp.float32),
            grid_spec=pltpu.PrefetchScalarGridSpec(
                num_scalar_prefetch=0,
                grid=(n_pad // tile, kt),
                in_specs=[
                    pl.BlockSpec((tile, c_tile), lambda i, k: (i, k)),
                    pl.BlockSpec((tile, 1), lambda i, k: (i, 0)),
                ],
                out_specs=pl.BlockSpec((tile, 1), lambda i, k: (i, 0)),
                scratch_shapes=[pltpu.VMEM((tile, 1), jnp.float32)] * 4,
            ),
            compiler_params=pltpu.CompilerParams(
                dimension_semantics=("parallel", "arbitrary"),
                vmem_limit_bytes=vmem_limit,
            ),
        )(x, t2d)

    # Tiny final reduction (N f32 values) in plain JAX; padded rows sliced out.
    return jnp.sum(per_row_loss[:N, 0]) / N


# ---------------------------------------------------------------------------
# Reference (mirrors the PyTorch module)
# ---------------------------------------------------------------------------
def _reference(pred, target, classes, smoothing):
    logp = jax.nn.log_softmax(pred.astype(jnp.float32), axis=-1)
    confidence = 1.0 - smoothing
    true_dist = jnp.full_like(logp, smoothing / (classes - 1))
    true_dist = true_dist.at[jnp.arange(pred.shape[0]), target].set(confidence)
    return jnp.mean(jnp.sum(-true_dist * logp, axis=-1))


if __name__ == "__main__":
    key = jax.random.PRNGKey(0)
    kx, kt_key, kx2, kt2 = jax.random.split(key, 4)

    # Small demo: 16 samples, 32 classes (single class-block fast path).
    N, C = 16, 32
    x = jax.random.normal(kx, (N, C), dtype=jnp.float32)
    tgt = jax.random.randint(kt_key, (N,), 0, C, dtype=jnp.int32)
    for smoothing in (0.1, 0.0):
        loss = jax.block_until_ready(
            label_smoothing_loss(x, tgt, classes=C, smoothing=smoothing))
        ref = _reference(x, tgt, C, smoothing)
        assert jnp.allclose(loss, ref, atol=1e-4, rtol=1e-4), (smoothing, loss, ref)

    # bf16 input exercises the native-dtype (no blanket f32 cast) passes.
    xb = x.astype(jnp.bfloat16)
    loss = jax.block_until_ready(
        label_smoothing_loss(xb, tgt, classes=C, smoothing=0.1))
    ref = _reference(xb, tgt, C, 0.1)
    assert jnp.allclose(loss, ref, atol=1e-3, rtol=1e-3), (loss, ref)

    # Exercise the class-tiled (online logsumexp) path at small scale:
    # C=300 with a 128-wide class tile -> 3 class blocks, masked padded tail.
    N2, C2 = 16, 300
    x2 = jax.random.normal(kx2, (N2, C2), dtype=jnp.float32)
    tgt2 = jax.random.randint(kt2, (N2,), 0, C2, dtype=jnp.int32)
    loss = jax.block_until_ready(
        label_smoothing_loss(x2, tgt2, classes=C2, smoothing=0.1,
                             force_class_tiling=True, class_tile=128))
    ref = _reference(x2, tgt2, C2, 0.1)
    assert jnp.allclose(loss, ref, atol=1e-4, rtol=1e-4), (loss, ref)

    print("KERNEL_OK")
</pallas_src>

<mosaic_0001>
module attributes {stable_mosaic.version = 11 : i64} {
  func.func @_ls_kernel_single_block(%arg0: i32, %arg1: memref<8x32xf32, #tpu.memory_space<vmem>>, %arg2: memref<8x1xi32, #tpu.memory_space<vmem>>, %arg3: memref<8x1xf32, #tpu.memory_space<vmem>>) attributes {dimension_semantics = [#tpu.dimension_semantics<parallel>], iteration_bounds = array<i64: 2>, scalar_prefetch = 0 : i64, scratch_operands = 0 : i64, tpu.core_type = #tpu.core_type<tc>, window_params = [{transform_indices = @transform_0, window_bounds = array<i64: 8, 32>}, {transform_indices = @transform_1, window_bounds = array<i64: 8, 1>}, {transform_indices = @transform_2, window_bounds = array<i64: 8, 1>}]} {
    %c0 = arith.constant 0 : index
    %c0_0 = arith.constant 0 : index
    %0 = vector.load %arg1[%c0, %c0_0] : memref<8x32xf32, #tpu.memory_space<vmem>>, vector<8x32xf32>
    %c0_1 = arith.constant 0 : index
    %c0_2 = arith.constant 0 : index
    %1 = vector.load %arg2[%c0_1, %c0_2] : memref<8x1xi32, #tpu.memory_space<vmem>>, vector<8x1xi32>
    %cst = arith.constant dense<0xFF800000> : vector<8xf32>
    %2 = vector.multi_reduction <maximumf>, %0, %cst [1] : vector<8x32xf32> to vector<8xf32>
    %3 = vector.shape_cast %2 : vector<8xf32> to vector<8x1xf32>
    %4 = tpu.iota {dimensions = array<i32: 1>} : vector<8x32xi32>
    %5 = vector.broadcast %1 : vector<8x1xi32> to vector<8x32xi32>
    %6 = arith.cmpi eq, %4, %5 : vector<8x32xi32>
    %cst_3 = arith.constant 0.000000e+00 : f32
    %7 = vector.broadcast %cst_3 : f32 to vector<8x32xf32>
    %8 = arith.select %6, %0, %7 : vector<8x32xi1>, vector<8x32xf32>
    %cst_4 = arith.constant dense<0.000000e+00> : vector<8xf32>
    %9 = vector.multi_reduction <add>, %8, %cst_4 [1] : vector<8x32xf32> to vector<8xf32>
    %10 = vector.shape_cast %9 : vector<8xf32> to vector<8x1xf32>
    %cst_5 = arith.constant dense<0.000000e+00> : vector<8xf32>
    %11 = vector.multi_reduction <add>, %0, %cst_5 [1] : vector<8x32xf32> to vector<8xf32>
    %12 = vector.shape_cast %11 : vector<8xf32> to vector<8x1xf32>
    %13 = vector.broadcast %3 : vector<8x1xf32> to vector<8x32xf32>
    %14 = arith.subf %0, %13 : vector<8x32xf32>
    %15 = math.exp %14 : vector<8x32xf32>
    %cst_6 = arith.constant dense<0.000000e+00> : vector<8xf32>
    %16 = vector.multi_reduction <add>, %15, %cst_6 [1] : vector<8x32xf32> to vector<8xf32>
    %17 = vector.shape_cast %16 : vector<8xf32> to vector<8x1xf32>
    %18 = math.log %17 : vector<8x1xf32>
    %19 = arith.subf %10, %3 : vector<8x1xf32>
    %cst_7 = arith.constant 3.200000e+01 : f32
    %20 = vector.broadcast %cst_7 : f32 to vector<8x1xf32>
    %21 = arith.mulf %20, %3 : vector<8x1xf32>
    %22 = arith.subf %12, %21 : vector<8x1xf32>
    %23 = arith.subf %18, %19 : vector<8x1xf32>
    %cst_8 = arith.constant 0.899999976 : f32
    %24 = vector.broadcast %cst_8 : f32 to vector<8x1xf32>
    %25 = arith.mulf %24, %23 : vector<8x1xf32>
    %cst_9 = arith.constant 3.100000e+01 : f32
    %26 = vector.broadcast %cst_9 : f32 to vector<8x1xf32>
    %27 = arith.mulf %26, %18 : vector<8x1xf32>
    %28 = arith.addf %27, %19 : vector<8x1xf32>
    %29 = arith.subf %28, %22 : vector<8x1xf32>
    %cst_10 = arith.constant 0.0032258064 : f32
    %30 = vector.broadcast %cst_10 : f32 to vector<8x1xf32>
    %31 = arith.mulf %30, %29 : vector<8x1xf32>
    %32 = arith.addf %25, %31 : vector<8x1xf32>
    %c0_11 = arith.constant 0 : index
    %c0_12 = arith.constant 0 : index
    %33 = vector.load %arg3[%c0_11, %c0_12] : memref<8x1xf32, #tpu.memory_space<vmem>>, vector<8x1xf32>
    tpu.vector_store %arg3[%c0_11, %c0_12], %32 {strides = array<i32>} : memref<8x1xf32, #tpu.memory_space<vmem>>, vector<8x1xf32>,
    return
  }
  func.func @transform_0(%arg0: i32) -> (i32, i32) {
    %c0_i32 = arith.constant 0 : i32
    %c0_i32_0 = arith.constant 0 : i32
    return %arg0, %c0_i32 : i32, i32
  }
  func.func @transform_1(%arg0: i32) -> (i32, i32) {
    %c0_i32 = arith.constant 0 : i32
    %c0_i32_0 = arith.constant 0 : i32
    return %arg0, %c0_i32 : i32, i32
  }
  func.func @transform_2(%arg0: i32) -> (i32, i32) {
    %c0_i32 = arith.constant 0 : i32
    %c0_i32_0 = arith.constant 0 : i32
    return %arg0, %c0_i32 : i32, i32
  }
}

</mosaic_0001>

<llo_original>
// kernel: tpu_custom_call.1
$region0: #{tpu_custom_call.1}
  #allocation0 [shape = 'u32[]', space=smem, size = 0x4, offset = 0x4, fixed_abs, tag = 'smem constant byte address 0x4 - core index']
  #allocation1 [shape = 'u32[72,128]{1,0:T(1,128)}', space=vmem, size = 0x9000, scoped, tag = 'internal scratch']
  %s0 = inlined_call_operand.vmem [shape: f32[16,32], index: 0, kind: input, shape index: {}]
  %s1 = inlined_call_operand.vmem [shape: s32[16,1], index: 1, kind: input, shape index: {}]
  %s2 = inlined_call_operand.vmem [shape: f32[16,1], index: 2, kind: output, shape index: {}]
  %s3 = sld [smem:[#allocation0]]
  $region41: #{tpu_custom_call.1} parent=0
    _
  %s5 = ssub.s32 1, %s3
  %s6 = scalar_select 0, %s5, %s3
  loop: start=0, step=1, limit=4
  $region2: #{tpu_custom_call.1} parent=0 // loop_pre_header
    _
  $region3: #{tpu_custom_call.1} parent=0 // loop_header
    %s8 = sphi 0, %s12
    %p9 = scmp.ge.s32.totalorder %s8, 4
    %s18 = sphi 0, %s20
    %s21 = sphi 0, %s18
    %s22 = sphi 0, %s21
    %s38 = sphi 0, %s22
    %s44 = sphi 0, %s46
    %s47 = sphi 0, %s44
    %s48 = sphi 0, %s47
    %s64 = sphi 0, %s48
    %s70 = sphi 0, %s72
    %s73 = sphi 0, %s70
    %s74 = sphi 0, %s73
    %s90 = sphi 0, %s74
  $region4: #{tpu_custom_call.1} parent=0 // loop_header_branch
    %11 = sbr.rel (%p9) target = $region8
  $region5: #{tpu_custom_call.1} parent=0 // loop_body
    %s13 = ssub.s32 %s8, 1
    %s14 = ssub.s32 %s8, 2
    %s15 = sadd.s32 %s8, 1
    %s16 = ssub.s32 %s8, %s15
    %p17 = scmp.eq.s32.totalorder %s16, 0
    %s19 = sadd.s32 %s18, 1
    %s20 = scalar_select %p17, %s18, %s19
    %p23 = pneg %p17
    %p24 = scmp.eq.s32.totalorder %s8, 1
    %p25 = por %p23, %p24
    %p26 = scmp.ne.s32.totalorder %s18, %s21
    %p27 = scmp.eq.s32.totalorder %s8, 0
    %p28 = por %p26, %p27
    %p29 = scmp.ne.s32.totalorder %s18, %s21
    %p30 = scmp.eq.s32.totalorder %s13, 1
    %p31 = por %p29, %p30
    %p32 = scmp.ne.s32.totalorder %s21, %s22
    %p33 = scmp.eq.s32.totalorder %s13, 0
    %p34 = por %p32, %p33
    %p35 = scmp.ne.s32.totalorder %s21, %s22
    %p36 = scmp.eq.s32.totalorder %s14, 1
    %p37 = por %p35, %p36
    %p39 = scmp.ne.s32.totalorder %s22, %s38
    %p40 = scmp.eq.s32.totalorder %s14, 0
    %p41 = por %p39, %p40
    %s42 = ssub.s32 %s8, %s15
    %p43 = scmp.eq.s32.totalorder %s42, 0
    %s45 = sadd.s32 %s44, 1
    %s46 = scalar_select %p43, %s44, %s45
    %p49 = pneg %p43
    %p50 = scmp.eq.s32.totalorder %s8, 1
    %p51 = por %p49, %p50
    %p52 = scmp.ne.s32.totalorder %s44, %s47
    %p53 = scmp.eq.s32.totalorder %s8, 0
    %p54 = por %p52, %p53
    %p55 = scmp.ne.s32.totalorder %s44, %s47
    %p56 = scmp.eq.s32.totalorder %s13, 1
    %p57 = por %p55, %p56
    %p58 = scmp.ne.s32.totalorder %s47, %s48
    %p59 = scmp.eq.s32.totalorder %s13, 0
    %p60 = por %p58, %p59
    %p61 = scmp.ne.s32.totalorder %s47, %s48
    %p62 = scmp.eq.s32.totalorder %s14, 1
    %p63 = por %p61, %p62
    %p65 = scmp.ne.s32.totalorder %s48, %s64
    %p66 = scmp.eq.s32.totalorder %s14, 0
    %p67 = por %p65, %p66
    %s68 = ssub.s32 %s8, %s15
    %p69 = scmp.eq.s32.totalorder %s68, 0
    %s71 = sadd.s32 %s70, 1
    %s72 = scalar_select %p69, %s70, %s71
    %p75 = pneg %p69
    %p76 = scmp.eq.s32.totalorder %s8, 1
    %p77 = por %p75, %p76
    %p78 = scmp.ne.s32.totalorder %s70, %s73
    %p79 = scmp.eq.s32.totalorder %s8, 0
    %p80 = por %p78, %p79
    %p81 = scmp.ne.s32.totalorder %s70, %s73
    %p82 = scmp.eq.s32.totalorder %s13, 1
    %p83 = por %p81, %p82
    %p84 = scmp.ne.s32.totalorder %s73, %s74
    %p85 = scmp.eq.s32.totalorder %s13, 0
    %p86 = por %p84, %p85
    %p87 = scmp.ne.s32.totalorder %s73, %s74
    %p88 = scmp.eq.s32.totalorder %s14, 1
    %p89 = por %p87, %p88
    %p91 = scmp.ne.s32.totalorder %s74, %s90
    %p92 = scmp.eq.s32.totalorder %s14, 0
    %p93 = por %p91, %p92
    %p94 = scmp.le.s32.totalorder 1, %s8
    %p95 = scmp.lt.s32.totalorder %s8, 3
    %p96 = pnand %p94, %p95
    %p97 = pneg %p96
    // Predicated region
    $region9: #{tpu_custom_call.1} parent=5 // pred_check
      _
    $region10: #{tpu_custom_call.1} parent=5 // pred_check_branch
      %99 = sbr.rel (%p96) target = $region12
    $region11: #{tpu_custom_call.1} parent=5 // pred_region
      %s100 = ssub.s32 %s8, 1
    $region12: #{tpu_custom_call.1} parent=5 // pred_fallthru
      _
    %p101 = scmp.lt.s32.totalorder %s8, 2
    // Predicated region
    $region13: #{tpu_custom_call.1} parent=5 // pred_check
      %p102 = pneg %p101
    $region14: #{tpu_custom_call.1} parent=5 // pred_check_branch
      %104 = sbr.rel (%p102) target = $region16
    $region15: #{tpu_custom_call.1} parent=5 // pred_region
      // Predicated region
      $region17: #{tpu_custom_call.1} parent=15 // pred_check
        %p105 = pneg %p28
      $region18: #{tpu_custom_call.1} parent=15 // pred_check_branch
        %107 = sbr.rel (%p105) target = $region20
      $region19: #{tpu_custom_call.1} parent=15 // pred_region
        %p108 = scmp.lt.s32.totalorder %s8, 1
        %s109 = scalar_select %p108, %s8, 1
        %s110 = smul.addr %s109, 8
        %s111 = scalar_lea.vmem %s0, %s110
      $region20: #{tpu_custom_call.1} parent=15 // pred_fallthru
        _
      // Predicated region
      $region21: #{tpu_custom_call.1} parent=15 // pred_check
        %p112 = pneg %p54
      $region22: #{tpu_custom_call.1} parent=15 // pred_check_branch
        %114 = sbr.rel (%p112) target = $region24
      $region23: #{tpu_custom_call.1} parent=15 // pred_region
        %p115 = scmp.lt.s32.totalorder %s8, 1
        %s116 = scalar_select %p115, %s8, 1
        %s117 = smul.addr %s116, 8
        %s118 = scalar_lea.vmem %s1, %s117
      $region24: #{tpu_custom_call.1} parent=15 // pred_fallthru
        _
    $region16: #{tpu_custom_call.1} parent=5 // pred_fallthru
      _
    %p119 = scmp.le.s32.totalorder 1, %s8
    %p120 = scmp.lt.s32.totalorder %s8, 3
    %p121 = pnand %p119, %p120
    %p122 = pneg %p121
    // Predicated region
    $region25: #{tpu_custom_call.1} parent=5 // pred_check
      _
    $region26: #{tpu_custom_call.1} parent=5 // pred_check_branch
      %124 = sbr.rel (%p121) target = $region28
    $region27: #{tpu_custom_call.1} parent=5 // pred_region
      %s125 = ssub.s32 %s8, 1
      %p126 = scmp.lt.s32.totalorder %s13, 1
      %s127 = scalar_select %p126, %s13, 1
      %s128 = smul.addr %s127, 8
      %s129 = scalar_lea.vmem %s0, %s128
      %p130 = pneg %p34
      %p131 = pneg %p31
      %p132 = scmp.lt.s32.totalorder %s13, 1
      %s133 = scalar_select %p132, %s13, 1
      %s134 = smul.addr %s133, 8
      %s135 = scalar_lea.vmem %s1, %s134
      %p136 = pneg %p60
      %p137 = pneg %p57
      %p138 = pneg %p86
      %p139 = pneg %p83
      %p140 = scmp.lt.s32.totalorder %s13, 1
      %s141 = scalar_select %p140, %s13, 1
      %s142 = smul.addr %s141, 8
      %s143 = scalar_lea.vmem %s2, %s142
      %p144 = scmp.lt.s32.totalorder %s13, 1
      %s145 = scalar_select %p144, %s13, 1
      %s146 = smul.addr %s145, 8
      %s147 = scalar_lea.vmem %s0, %s146
      %p148 = scmp.lt.s32.totalorder %s13, 1
      %s149 = scalar_select %p148, %s13, 1
      %s150 = smul.addr %s149, 8
      %s151 = scalar_lea.vmem %s1, %s150
      %p152 = scmp.lt.s32.totalorder %s13, 1
      %s153 = scalar_select %p152, %s13, 1
      %s154 = smul.addr %s153, 8
      %s155 = scalar_lea.vmem %s2, %s154
      %v156 = vld [vmem:[%s147] sm:$0xff]
      %v157 = vld [vmem:[%s151] sm:$0xff]
      %vm158 = vcmask 261120
      %v159 = vsel %vm158, %v156, -inf
      %160 = vmax.xlane.f32.xlu0 %v159
      %v161 = vpop.xlane.xlu0 %160
      %v162 = vlaneseq
      %v163 = vand.u32 %v162, 127
      %164 = vset.pattern.permute.xlu0 0
      %165 = vperm.xlu0 %164, %v157
      %v166 = vpop.permute.xlu0 %165
      %vm167 = vcmp.eq.s32.totalorder %v163, %v166
      %v168 = vsel %vm167, %v156, 0.0
      %v169 = vsel %vm158, %v168, 0.0
      %170 = vadd.xlane.f32.xlu0 %v169
      %v171 = vpop.xlane.xlu0 %170
      %v172 = vsel %vm158, %v156, 0.0
      %173 = vadd.xlane.f32.xlu0 %v172
      %v174 = vpop.xlane.xlu0 %173
      %v175 = vsub.f32 %v156, %v161
      %v176 = vmul.f32 %v175, 1.442695
      %v177 = vpow.pop %v176
      %v178 = vsel %vm158, %v177, 0.0
      %179 = vadd.xlane.f32.xlu0 %v178
      %v180 = vpop.xlane.xlu0 %179
      %v181 = vlog2.pop %v180
      %v182 = vmul.f32 %v181, 0.6931472
      %v183 = vsub.f32 %v171, %v161
      %v184 = vmul.f32 %v161, 32.0
      %v185 = vsub.f32 %v174, %v184
      %v186 = vsub.f32 %v182, %v183
      %v187 = vmul.f32 %v186, 0.9
      %v188 = vmul.f32 %v182, 31.0
      %v189 = vadd.f32 %v188, %v183
      %v190 = vsub.f32 %v189, %v185
      %v191 = vmul.f32 %v190, 0.0032258064
      %v192 = vadd.f32 %v187, %v191
      %vm193 = vcmask 7168
      %194 = vst.msk [vmem:[%s155] sm:$0xff] %vm193, %v192
      %p195 = scmp.lt.s32.totalorder %s13, 1
      %s196 = scalar_select %p195, %s13, 1
      %s197 = smul.addr %s196, 8
      %s198 = scalar_lea.vmem %s2, %s197
      // Predicated region
      $region29: #{tpu_custom_call.1} parent=27 // pred_check
        %p199 = pneg %p83
      $region30: #{tpu_custom_call.1} parent=27 // pred_check_branch
        %201 = sbr.rel (%p199) target = $region32
      $region31: #{tpu_custom_call.1} parent=27 // pred_region
        _
      $region32: #{tpu_custom_call.1} parent=27 // pred_fallthru
        _
    $region28: #{tpu_custom_call.1} parent=5 // pred_fallthru
      _
    %p202 = scmp.le.s32.totalorder 2, %s8
    // Predicated region
    $region33: #{tpu_custom_call.1} parent=5 // pred_check
      %p203 = pneg %p202
    $region34: #{tpu_custom_call.1} parent=5 // pred_check_branch
      %205 = sbr.rel (%p203) target = $region36
    $region35: #{tpu_custom_call.1} parent=5 // pred_region
      %s206 = ssub.s32 %s8, 2
      // Predicated region
      $region37: #{tpu_custom_call.1} parent=35 // pred_check
        %p207 = pneg %p89
      $region38: #{tpu_custom_call.1} parent=35 // pred_check_branch
        %209 = sbr.rel (%p207) target = $region40
      $region39: #{tpu_custom_call.1} parent=35 // pred_region
        %p210 = scmp.lt.s32.totalorder %s14, 1
        %s211 = scalar_select %p210, %s14, 1
        %s212 = smul.addr %s211, 8
        %s213 = scalar_lea.vmem %s2, %s212
      $region40: #{tpu_custom_call.1} parent=35 // pred_fallthru
        _
    $region36: #{tpu_custom_call.1} parent=5 // pred_fallthru
      _
  $region6: #{tpu_custom_call.1} parent=0 // loop_footer
    %s12 = sadd.s32 1, %s8
  $region7: #{tpu_custom_call.1} parent=0 // loop_footer_branch
    %7 = sbr.rel target = $region3
  $region8: #{tpu_custom_call.1} parent=0 // loop_exit
    _

</llo_original>
